<compile_context>
chip_gen: v6e
topology: v6e:2x2x1
jax: 0.10.0
libtpu: 0.0.40
codegen_flags: <defaults>
</compile_context>

<pallas_src>
import jax
import jax.numpy as jnp
from jax.experimental import pallas as pl
from jax.experimental.pallas import tpu as pltpu

INPUT_SIZE = 87
HIDDEN_SIZE = 64
OUTPUT_SIZE = 16


def _round_up(n, m):
    return ((n + m - 1) // m) * m


def simple_ann_kernel(x_ref, w1_ref, b1_ref, w2_ref, b2_ref, o_ref):
    # fc1: [TB, 87] @ [87, 64] -> f32 accumulation on the MXU (Mosaic lane-pads K).
    h = jnp.dot(x_ref[...], w1_ref[...], preferred_element_type=jnp.float32)
    # Bias + sigmoid in f32 (exp goes to the EUP slot).
    h = jax.nn.sigmoid(h + b1_ref[...])
    # fc2: [TB, 64] @ [64, 16] -> f32 accumulation; cast h to the MXU input dtype.
    out = jnp.dot(h.astype(w2_ref.dtype), w2_ref[...],
                  preferred_element_type=jnp.float32)
    o_ref[...] = (out + b2_ref[...]).astype(o_ref.dtype)


def simple_ann_forward(x, w1, b1, w2, b2, *, block_b=4096, use_bf16=False):
    """x: [B, INPUT_SIZE]. w1: [INPUT_SIZE, HIDDEN], b1: [1, HIDDEN],
    w2: [HIDDEN, OUTPUT], b2: [1, OUTPUT]. Returns [B, OUTPUT] f32."""
    B = x.shape[0]
    in_dtype = jnp.bfloat16 if use_bf16 else jnp.float32
    itemsize = 2 if use_bf16 else 4

    # Dtype casts only (no shape pads — no extra HBM passes over x).
    x_c = x.astype(in_dtype)
    w1_c = w1.astype(in_dtype)
    w2_c = w2.astype(in_dtype)
    b1_c = b1.astype(jnp.float32)
    b2_c = b2.astype(jnp.float32)

    # Batch tile: round to the sublane pack so any caller block_b lowers cleanly.
    pack = 16 if use_bf16 else 8
    tb = _round_up(min(block_b, B), pack)
    grid = (pl.cdiv(B, tb),)  # ragged tail handled by Pallas edge-block masking

    # Scoped-VMEM budget: double-buffered x/out tiles + weights, with headroom.
    vmem_bytes = (
        2 * tb * INPUT_SIZE * itemsize            # x tiles (double buffered)
        + 2 * tb * OUTPUT_SIZE * 4                # out tiles (double buffered)
        + 2 * (INPUT_SIZE * HIDDEN_SIZE + HIDDEN_SIZE * OUTPUT_SIZE) * itemsize
        + 2 * (HIDDEN_SIZE + OUTPUT_SIZE) * 4
    )
    vmem_limit = int(min(max(2 * vmem_bytes + (2 << 20), 16 << 20), 48 << 20))

    # Advisory cost: helps XLA overlap producers/consumers with the custom call.
    cost = pl.CostEstimate(
        flops=2 * B * (INPUT_SIZE * HIDDEN_SIZE + HIDDEN_SIZE * OUTPUT_SIZE),
        transcendentals=B * HIDDEN_SIZE,
        bytes_accessed=(
            B * INPUT_SIZE * itemsize + B * OUTPUT_SIZE * 4
            + (INPUT_SIZE * HIDDEN_SIZE + HIDDEN_SIZE * OUTPUT_SIZE) * itemsize
            + (HIDDEN_SIZE + OUTPUT_SIZE) * 4
        ),
    )

    out = pl.pallas_call(
        simple_ann_kernel,
        out_shape=jax.ShapeDtypeStruct((B, OUTPUT_SIZE), jnp.float32),
        grid=grid,
        in_specs=[
            pl.BlockSpec((tb, INPUT_SIZE), lambda i: (i, 0)),          # x tile (pipelined)
            pl.BlockSpec((INPUT_SIZE, HIDDEN_SIZE), lambda i: (0, 0)),  # w1 (VMEM-resident)
            pl.BlockSpec((1, HIDDEN_SIZE), lambda i: (0, 0)),           # b1
            pl.BlockSpec((HIDDEN_SIZE, OUTPUT_SIZE), lambda i: (0, 0)),  # w2
            pl.BlockSpec((1, OUTPUT_SIZE), lambda i: (0, 0)),           # b2
        ],
        out_specs=pl.BlockSpec((tb, OUTPUT_SIZE), lambda i: (i, 0)),
        compiler_params=pltpu.CompilerParams(
            # Batch steps are independent -> shard grid across v7x's 2 TensorCores.
            dimension_semantics=("parallel",),
            vmem_limit_bytes=vmem_limit,
        ),
        cost_estimate=cost,
    )(x_c, w1_c, b1_c, w2_c, b2_c)

    return out


def init_params(key):
    """Deterministic init mirroring nn.Linear shapes (stored transposed: [in, out])."""
    k1, k2, k3, k4 = jax.random.split(key, 4)
    lim1 = 1.0 / jnp.sqrt(INPUT_SIZE)
    lim2 = 1.0 / jnp.sqrt(HIDDEN_SIZE)
    w1 = jax.random.uniform(k1, (INPUT_SIZE, HIDDEN_SIZE), jnp.float32, -lim1, lim1)
    b1 = jax.random.uniform(k2, (1, HIDDEN_SIZE), jnp.float32, -lim1, lim1)
    w2 = jax.random.uniform(k3, (HIDDEN_SIZE, OUTPUT_SIZE), jnp.float32, -lim2, lim2)
    b2 = jax.random.uniform(k4, (1, OUTPUT_SIZE), jnp.float32, -lim2, lim2)
    return w1, b1, w2, b2


def reference_forward(x, w1, b1, w2, b2):
    h = jax.nn.sigmoid(x @ w1 + b1)
    return h @ w2 + b2


if __name__ == "__main__":
    key = jax.random.PRNGKey(0)
    kx, kp = jax.random.split(key)
    w1, b1, w2, b2 = init_params(kp)

    # Small primary check (f32, single grid step).
    batch = 8
    x = jax.random.normal(kx, (batch, INPUT_SIZE), jnp.float32)
    out = jax.block_until_ready(simple_ann_forward(x, w1, b1, w2, b2))
    ref = reference_forward(x, w1, b1, w2, b2)
    assert out.shape == (batch, OUTPUT_SIZE)
    assert jnp.allclose(out, ref, atol=1e-5, rtol=1e-5)

    # Multi-step grid + ragged batch tail (exercises edge-block masking, no wrapper pad).
    batch2 = 300
    x2 = jax.random.normal(kx, (batch2, INPUT_SIZE), jnp.float32)
    out2 = jax.block_until_ready(simple_ann_forward(x2, w1, b1, w2, b2, block_b=128))
    ref2 = reference_forward(x2, w1, b1, w2, b2)
    assert out2.shape == (batch2, OUTPUT_SIZE)
    assert jnp.allclose(out2, ref2, atol=1e-5, rtol=1e-5)

    # bf16-input path (halves x HBM read bytes on all gens); f32 accumulation.
    # Loose tolerance: x and h are each rounded to bf16 (~1e-2-level error).
    out3 = jax.block_until_ready(
        simple_ann_forward(x2, w1, b1, w2, b2, block_b=128, use_bf16=True))
    assert jnp.allclose(out3, ref2, atol=1e-1, rtol=1e-1)

    print("KERNEL_OK")
</pallas_src>

<mosaic_0001>
module attributes {stable_mosaic.version = 11 : i64} {
  func.func @simple_ann_kernel(%arg0: i32, %arg1: memref<8x87xf32, #tpu.memory_space<vmem>>, %arg2: memref<87x64xf32, #tpu.memory_space<vmem>>, %arg3: memref<1x64xf32, #tpu.memory_space<vmem>>, %arg4: memref<64x16xf32, #tpu.memory_space<vmem>>, %arg5: memref<1x16xf32, #tpu.memory_space<vmem>>, %arg6: memref<8x16xf32, #tpu.memory_space<vmem>>) attributes {dimension_semantics = [#tpu.dimension_semantics<parallel>], iteration_bounds = array<i64: 1>, scalar_prefetch = 0 : i64, scratch_operands = 0 : i64, tpu.core_type = #tpu.core_type<tc>, window_params = [{transform_indices = @transform_0, window_bounds = array<i64: 8, 87>}, {pipeline_mode = #tpu.pipeline_mode<synchronous>, transform_indices = @transform_1, window_bounds = array<i64: 87, 64>}, {pipeline_mode = #tpu.pipeline_mode<synchronous>, transform_indices = @transform_2, window_bounds = array<i64: 1, 64>}, {pipeline_mode = #tpu.pipeline_mode<synchronous>, transform_indices = @transform_3, window_bounds = array<i64: 64, 16>}, {pipeline_mode = #tpu.pipeline_mode<synchronous>, transform_indices = @transform_4, window_bounds = array<i64: 1, 16>}, {transform_indices = @transform_5, window_bounds = array<i64: 8, 16>}]} {
    %c0 = arith.constant 0 : index
    %c0_0 = arith.constant 0 : index
    %0 = vector.load %arg1[%c0, %c0_0] : memref<8x87xf32, #tpu.memory_space<vmem>>, vector<8x87xf32>
    %c0_1 = arith.constant 0 : index
    %c0_2 = arith.constant 0 : index
    %1 = vector.load %arg2[%c0_1, %c0_2] : memref<87x64xf32, #tpu.memory_space<vmem>>, vector<87x64xf32>
    %cst = arith.constant dense<0.000000e+00> : vector<8x64xf32>
    %2 = tpu.matmul %0, %1, %cst {dimension_numbers = #tpu.dot_dimension_numbers<[1], [0], [0], [1], [0, 0, 1, 1], [], []>} : vector<8x87xf32>, vector<87x64xf32>, vector<8x64xf32> -> vector<8x64xf32>
    %c0_3 = arith.constant 0 : index
    %c0_4 = arith.constant 0 : index
    %3 = vector.load %arg3[%c0_3, %c0_4] : memref<1x64xf32, #tpu.memory_space<vmem>>, vector<1x64xf32>
    %4 = vector.broadcast %3 : vector<1x64xf32> to vector<8x64xf32>
    %5 = arith.addf %2, %4 : vector<8x64xf32>
    %6 = arith.negf %5 : vector<8x64xf32>
    %7 = math.exp %6 : vector<8x64xf32>
    %cst_5 = arith.constant 1.000000e+00 : f32
    %8 = vector.broadcast %cst_5 : f32 to vector<8x64xf32>
    %9 = arith.addf %8, %7 : vector<8x64xf32>
    %10 = arith.divf %8, %9 : vector<8x64xf32>
    %c0_6 = arith.constant 0 : index
    %c0_7 = arith.constant 0 : index
    %11 = vector.load %arg4[%c0_6, %c0_7] : memref<64x16xf32, #tpu.memory_space<vmem>>, vector<64x16xf32>
    %cst_8 = arith.constant dense<0.000000e+00> : vector<8x16xf32>
    %12 = tpu.matmul %10, %11, %cst_8 {dimension_numbers = #tpu.dot_dimension_numbers<[1], [0], [0], [1], [0, 0, 1, 1], [], []>} : vector<8x64xf32>, vector<64x16xf32>, vector<8x16xf32> -> vector<8x16xf32>
    %c0_9 = arith.constant 0 : index
    %c0_10 = arith.constant 0 : index
    %13 = vector.load %arg5[%c0_9, %c0_10] : memref<1x16xf32, #tpu.memory_space<vmem>>, vector<1x16xf32>
    %14 = vector.broadcast %13 : vector<1x16xf32> to vector<8x16xf32>
    %15 = arith.addf %12, %14 : vector<8x16xf32>
    %c0_11 = arith.constant 0 : index
    %c0_12 = arith.constant 0 : index
    %16 = vector.load %arg6[%c0_11, %c0_12] : memref<8x16xf32, #tpu.memory_space<vmem>>, vector<8x16xf32>
    tpu.vector_store %arg6[%c0_11, %c0_12], %15 {strides = array<i32>} : memref<8x16xf32, #tpu.memory_space<vmem>>, vector<8x16xf32>,
    return
  }
  func.func @transform_0(%arg0: i32) -> (i32, i32) {
    %c0_i32 = arith.constant 0 : i32
    %c0_i32_0 = arith.constant 0 : i32
    return %arg0, %c0_i32 : i32, i32
  }
  func.func @transform_1(%arg0: i32) -> (i32, i32) {
    %c0_i32 = arith.constant 0 : i32
    %c0_i32_0 = arith.constant 0 : i32
    %c0_i32_1 = arith.constant 0 : i32
    return %c0_i32, %c0_i32_0 : i32, i32
  }
  func.func @transform_2(%arg0: i32) -> (i32, i32) {
    %c0_i32 = arith.constant 0 : i32
    %c0_i32_0 = arith.constant 0 : i32
    %c0_i32_1 = arith.constant 0 : i32
    return %c0_i32, %c0_i32_0 : i32, i32
  }
  func.func @transform_3(%arg0: i32) -> (i32, i32) {
    %c0_i32 = arith.constant 0 : i32
    %c0_i32_0 = arith.constant 0 : i32
    %c0_i32_1 = arith.constant 0 : i32
    return %c0_i32, %c0_i32_0 : i32, i32
  }
  func.func @transform_4(%arg0: i32) -> (i32, i32) {
    %c0_i32 = arith.constant 0 : i32
    %c0_i32_0 = arith.constant 0 : i32
    %c0_i32_1 = arith.constant 0 : i32
    return %c0_i32, %c0_i32_0 : i32, i32
  }
  func.func @transform_5(%arg0: i32) -> (i32, i32) {
    %c0_i32 = arith.constant 0 : i32
    %c0_i32_0 = arith.constant 0 : i32
    return %arg0, %c0_i32 : i32, i32
  }
}

</mosaic_0001>

<llo_original>
// kernel: tpu_custom_call.1
$region0: #{tpu_custom_call.1}
  #allocation0 [shape = 'u32[]', space=smem, size = 0x4, offset = 0x4, fixed_abs, tag = 'smem constant byte address 0x4 - core index']
  #allocation1 [shape = 'u32[144,128]{1,0:T(1,128)}', space=vmem, size = 0x12000, scoped, tag = 'internal scratch']
  %s0 = inlined_call_operand.vmem [shape: f32[8,87], index: 0, kind: input, shape index: {}]
  %s1 = inlined_call_operand.vmem [shape: f32[87,64], index: 1, kind: input, shape index: {}]
  %s2 = inlined_call_operand.vmem [shape: f32[1,64], index: 2, kind: input, shape index: {}]
  %s3 = inlined_call_operand.vmem [shape: f32[64,16], index: 3, kind: input, shape index: {}]
  %s4 = inlined_call_operand.vmem [shape: f32[1,16], index: 4, kind: input, shape index: {}]
  %s5 = inlined_call_operand.hbm [shape: f32[8,16], index: 5, kind: output, shape index: {}]
  %s6 = sld [smem:[#allocation0]]
  $region30: #{tpu_custom_call.1} parent=0
    _
  %s8 = ssub.s32 1, %s6
  %s9 = scalar_select 0, %s8, %s6
  $region1: #{tpu_custom_call.1} parent=0
    #allocation2 [shape = 'u8[4096]{0}', space=vmem, size = 0x1000, scoped, tag = 'output window, operand 0, single buffered']
    #allocation3 [shape = 's32[1]{0}', space=sflag, size = 0x4, scoped, tag = 'scoped memory for tpu_custom_call.1']
    %10 = vsyncpa [#allocation3], 0
    // Predicated region
    $region2: #{tpu_custom_call.1} parent=1 // pred_check
      _
    $region3: #{tpu_custom_call.1} parent=1 // pred_check_branch
      %12 = sbr.rel (0) target = $region5
    $region4: #{tpu_custom_call.1} parent=1 // pred_region
      _
    $region5: #{tpu_custom_call.1} parent=1 // pred_fallthru
      _
    // Predicated region
    $region6: #{tpu_custom_call.1} parent=1 // pred_check
      _
    $region7: #{tpu_custom_call.1} parent=1 // pred_check_branch
      %14 = sbr.rel (0) target = $region9
    $region8: #{tpu_custom_call.1} parent=1 // pred_region
      _
    $region9: #{tpu_custom_call.1} parent=1 // pred_fallthru
      _
    // Predicated region
    $region10: #{tpu_custom_call.1} parent=1 // pred_check
      _
    $region11: #{tpu_custom_call.1} parent=1 // pred_check_branch
      %16 = sbr.rel (0) target = $region13
    $region12: #{tpu_custom_call.1} parent=1 // pred_region
      _
    $region13: #{tpu_custom_call.1} parent=1 // pred_fallthru
      _
    // Predicated region
    $region14: #{tpu_custom_call.1} parent=1 // pred_check
      _
    $region15: #{tpu_custom_call.1} parent=1 // pred_check_branch
      %18 = sbr.rel (0) target = $region17
    $region16: #{tpu_custom_call.1} parent=1 // pred_region
      _
    $region17: #{tpu_custom_call.1} parent=1 // pred_fallthru
      _
    // Predicated region
    $region18: #{tpu_custom_call.1} parent=1 // pred_check
      _
    $region19: #{tpu_custom_call.1} parent=1 // pred_check_branch
      %20 = sbr.rel (0) target = $region21
    $region20: #{tpu_custom_call.1} parent=1 // pred_region
      _
    $region21: #{tpu_custom_call.1} parent=1 // pred_fallthru
      _
    %v21 = vld [vmem:[%s0] sm:$0xff]
    %v22 = vld [vmem:[%s1] sm:$0xff]
    %v23 = vld [vmem:[%s1 + $0x8] sm:$0xff]
    %v24 = vld [vmem:[%s1 + $0x10] sm:$0xff]
    %v25 = vld [vmem:[%s1 + $0x18] sm:$0xff]
    %v26 = vld [vmem:[%s1 + $0x20] sm:$0xff]
    %v27 = vld [vmem:[%s1 + $0x28] sm:$0xff]
    %v28 = vld [vmem:[%s1 + $0x30] sm:$0xff]
    %v29 = vld [vmem:[%s1 + $0x38] sm:$0xff]
    %v30 = vld [vmem:[%s1 + $0x40] sm:$0xff]
    %v31 = vld [vmem:[%s1 + $0x48] sm:$0xff]
    %v32 = vld [vmem:[%s1 + $0x50] sm:$0x7f]
    %v33 = vld [vmem:[%s2] sm:$0x1]
    %v35 = vlaneseq
    %v36 = vshrl.u32 %v35, 7
    %v37 = vsub.s32 0, %v36
    %v38 = vrot.slane %v33, %v37
    %vm40 = vcmask 711680
    %v42 = vsel %vm40, %v21, 0
    %vm44 = vcmask 1046528
    %v46 = vsel %vm44, %v32, 0
    %48 = vmatprep.subr.mxu0 0.0
    %49 = vmatpush1.msra.mxu0 0.0
    %50 = vmatprep.subr.mxu0 0.0
    %51 = vmatpush1.msra.mxu0 0.0
    %52 = vmatprep.subr.mxu0 0.0
    %53 = vmatpush1.msra.mxu0 0.0
    %54 = vmatprep.subr.mxu0 0.0
    %55 = vmatpush1.msra.mxu0 0.0
    %56 = vmatprep.subr.mxu0 0.0
    %57 = vmatpush1.msra.mxu0 0.0
    %58 = vmatprep.subr.mxu0 0.0
    %59 = vmatpush1.msra.mxu0 %v46
    %60 = vmatprep.subr.mxu0 0.0
    %61 = vmatpush1.msra.mxu0 %v31
    %62 = vmatprep.subr.mxu0 0.0
    %63 = vmatpush1.msra.mxu0 %v30
    %64 = vmatprep.subr.mxu0 0.0
    %65 = vmatpush1.msra.mxu0 %v29
    %66 = vmatprep.subr.mxu0 0.0
    %67 = vmatpush1.msra.mxu0 %v28
    %68 = vmatprep.subr.mxu0 0.0
    %69 = vmatpush1.msra.mxu0 %v27
    %70 = vmatprep.subr.mxu0 0.0
    %71 = vmatpush1.msra.mxu0 %v26
    %72 = vmatprep.subr.mxu0 0.0
    %73 = vmatpush1.msra.mxu0 %v25
    %74 = vmatprep.subr.mxu0 0.0
    %75 = vmatpush1.msra.mxu0 %v24
    %76 = vmatprep.subr.mxu0 0.0
    %77 = vmatpush1.msra.mxu0 %v23
    %78 = vmatprep.subr.mxu0 0.0
    %79 = vmatpush1.msra.mxu0 %v22
    %80 = vmatprep.subr.mxu0 0.0
    %81 = vmatpush2.msra.mxu0 0.0
    %82 = vmatprep.subr.mxu0 0.0
    %83 = vmatpush2.msra.mxu0 0.0
    %84 = vmatprep.subr.mxu0 0.0
    %85 = vmatpush2.msra.mxu0 0.0
    %86 = vmatprep.subr.mxu0 0.0
    %87 = vmatpush2.msra.mxu0 0.0
    %88 = vmatprep.subr.mxu0 0.0
    %89 = vmatpush2.msra.mxu0 0.0
    %90 = vmatprep.subr.mxu0 0.0
    %91 = vmatpush2.msra.mxu0 0.0
    %92 = vmatprep.subr.mxu0 0.0
    %93 = vmatpush2.msra.mxu0 0.0
    %94 = vmatprep.subr.mxu0 0.0
    %95 = vmatpush2.msra.mxu0 0.0
    %96 = vmatprep.subr.mxu0 0.0
    %97 = vmatpush2.msra.mxu0 0.0
    %98 = vmatprep.subr.mxu0 0.0
    %99 = vmatpush2.msra.mxu0 0.0
    %100 = vmatprep.subr.mxu0 0.0
    %101 = vmatpush2.msra.mxu0 0.0
    %102 = vmatprep.subr.mxu0 0.0
    %103 = vmatpush2.msra.mxu0 0.0
    %104 = vmatprep.subr.mxu0 0.0
    %105 = vmatpush2.msra.mxu0 0.0
    %106 = vmatprep.subr.mxu0 0.0
    %107 = vmatpush2.msra.mxu0 0.0
    %108 = vmatprep.subr.mxu0 0.0
    %109 = vmatpush2.msra.mxu0 0.0
    %110 = vmatprep.subr.mxu0 0.0
    %111 = vmatpush2.msra.mxu0 0.0
    %112 = vmatprep.mubr.f32.mxu0 0.0
    %113 = vmatmul.mubr.f32.gmra.mxu0 %v42
    %v114 = vpop.f32.mrf.mxu0
    %v115 = vadd.f32 %v38, %v114
    %v116 = vpop.f32.mrf.mxu0
    %117 = vdwg.mxu0
    %v118 = vxor.u32 %v115, 2147483648
    %v119 = vmul.f32 %v118, 1.442695
    %v120 = vpow.pop %v119
    %v121 = vadd.f32 %v120, 1.0
    %v122 = vrcp.pop %v121
    %v123 = vmul.f32 1.0, %v122
    %v124 = vld [vmem:[%s3] sm:$0xff]
    %v125 = vld [vmem:[%s3 + $0x8] sm:$0xff]
    %v126 = vld [vmem:[%s3 + $0x10] sm:$0xff]
    %v127 = vld [vmem:[%s3 + $0x18] sm:$0xff]
    %v128 = vld [vmem:[%s3 + $0x20] sm:$0xff]
    %v129 = vld [vmem:[%s3 + $0x28] sm:$0xff]
    %v130 = vld [vmem:[%s3 + $0x30] sm:$0xff]
    %v131 = vld [vmem:[%s3 + $0x38] sm:$0xff]
    %v132 = vld [vmem:[%s4] sm:$0x1]
    %v134 = vlaneseq
    %v135 = vshrl.u32 %v134, 7
    %v136 = vsub.s32 0, %v135
    %v137 = vrot.slane %v132, %v136
    %vm139 = vcmask 523264
    %v141 = vsel %vm139, %v123, 0
    %143 = vmatprep.subr.mxu0 0.0
    %144 = vmatpush1.msra.mxu0 0.0
    %145 = vmatprep.subr.mxu0 0.0
    %146 = vmatpush1.msra.mxu0 0.0
    %147 = vmatprep.subr.mxu0 0.0
    %148 = vmatpush1.msra.mxu0 0.0
    %149 = vmatprep.subr.mxu0 0.0
    %150 = vmatpush1.msra.mxu0 0.0
    %151 = vmatprep.subr.mxu0 0.0
    %152 = vmatpush1.msra.mxu0 0.0
    %153 = vmatprep.subr.mxu0 0.0
    %154 = vmatpush1.msra.mxu0 0.0
    %155 = vmatprep.subr.mxu0 0.0
    %156 = vmatpush1.msra.mxu0 0.0
    %157 = vmatprep.subr.mxu0 0.0
    %158 = vmatpush1.msra.mxu0 0.0
    %159 = vmatprep.subr.mxu0 0.0
    %160 = vmatpush1.msra.mxu0 %v131
    %161 = vmatprep.subr.mxu0 0.0
    %162 = vmatpush1.msra.mxu0 %v130
    %163 = vmatprep.subr.mxu0 0.0
    %164 = vmatpush1.msra.mxu0 %v129
    %165 = vmatprep.subr.mxu0 0.0
    %166 = vmatpush1.msra.mxu0 %v128
    %167 = vmatprep.subr.mxu0 0.0
    %168 = vmatpush1.msra.mxu0 %v127
    %169 = vmatprep.subr.mxu0 0.0
    %170 = vmatpush1.msra.mxu0 %v126
    %171 = vmatprep.subr.mxu0 0.0
    %172 = vmatpush1.msra.mxu0 %v125
    %173 = vmatprep.subr.mxu0 0.0
    %174 = vmatpush1.msra.mxu0 %v124
    %175 = vmatprep.subr.mxu0 0.0
    %176 = vmatpush2.msra.mxu0 0.0
    %177 = vmatprep.subr.mxu0 0.0
    %178 = vmatpush2.msra.mxu0 0.0
    %179 = vmatprep.subr.mxu0 0.0
    %180 = vmatpush2.msra.mxu0 0.0
    %181 = vmatprep.subr.mxu0 0.0
    %182 = vmatpush2.msra.mxu0 0.0
    %183 = vmatprep.subr.mxu0 0.0
    %184 = vmatpush2.msra.mxu0 0.0
    %185 = vmatprep.subr.mxu0 0.0
    %186 = vmatpush2.msra.mxu0 0.0
    %187 = vmatprep.subr.mxu0 0.0
    %188 = vmatpush2.msra.mxu0 0.0
    %189 = vmatprep.subr.mxu0 0.0
    %190 = vmatpush2.msra.mxu0 0.0
    %191 = vmatprep.subr.mxu0 0.0
    %192 = vmatpush2.msra.mxu0 0.0
    %193 = vmatprep.subr.mxu0 0.0
    %194 = vmatpush2.msra.mxu0 0.0
    %195 = vmatprep.subr.mxu0 0.0
    %196 = vmatpush2.msra.mxu0 0.0
    %197 = vmatprep.subr.mxu0 0.0
    %198 = vmatpush2.msra.mxu0 0.0
    %199 = vmatprep.subr.mxu0 0.0
    %200 = vmatpush2.msra.mxu0 0.0
    %201 = vmatprep.subr.mxu0 0.0
    %202 = vmatpush2.msra.mxu0 0.0
    %203 = vmatprep.subr.mxu0 0.0
    %204 = vmatpush2.msra.mxu0 0.0
    %205 = vmatprep.subr.mxu0 0.0
    %206 = vmatpush2.msra.mxu0 0.0
    %207 = vmatprep.mubr.f32.mxu0 0.0
    %208 = vmatmul.mubr.f32.gmra.mxu0 %v141
    %v209 = vpop.f32.mrf.mxu0
    %v210 = vadd.f32 %v137, %v209
    %v211 = vpop.f32.mrf.mxu0
    %212 = vdwg.mxu0
    %vm213 = vcmask 130048
    %214 = vst.msk [vmem:[#allocation2] sm:$0xff] %vm213, %v210
    // Predicated region
    $region22: #{tpu_custom_call.1} parent=1 // pred_check
      _
    $region23: #{tpu_custom_call.1} parent=1 // pred_check_branch
      %216 = sbr.rel (0) target = $region25
    $region24: #{tpu_custom_call.1} parent=1 // pred_region
      %s218 = ssub.s32 128, 128
      %219 = vsyncadd [#allocation3], %s218
      %s221 = sshll.u32 [#allocation2], 4
      %s222 = int_to_ptr.vmem [resolvable:$true] %s221
      %224 = dma.vmem_to_hbm [thread:$0]  %s222, 128, %s5, [#allocation3]
    $region25: #{tpu_custom_call.1} parent=1 // pred_fallthru
      _
    // Predicated region
    $region26: #{tpu_custom_call.1} parent=1 // pred_check
      _
    $region27: #{tpu_custom_call.1} parent=1 // pred_check_branch
      %226 = sbr.rel (0) target = $region29
    $region28: #{tpu_custom_call.1} parent=1 // pred_region
      %227 = dma.done [#allocation3], 128
    $region29: #{tpu_custom_call.1} parent=1 // pred_fallthru
      _
    %228 = vsyncpa [#allocation3], 1

</llo_original>
